<compile_context>
chip_gen: v7x
topology: tpu7x:2x2x1
jax: 0.10.0
libtpu: 0.0.40
codegen_flags: <defaults>
</compile_context>

<pallas_src>
from functools import partial

import jax
import jax.numpy as jnp
from jax.experimental import pallas as pl
from jax.experimental.pallas import tpu as pltpu

# Hopper-v4 dimensions
NUM_INPUTS = 11
NUM_OUTPUTS = 3
HIDDEN = 64
NUM_ENVS = 16        # number of envs in the PyTorch script
ROLLOUT_STEPS = 16   # batch many timesteps into one call (amortization)
IN_PAD = 16          # padded input lanes: 11 obs + 1 constant + 4 zero
TILE_B = 128         # batch-tile rows per grid step (use 256 on v6e/v7x if B allows)


def actor_critic_kernel(x_ref, w1_ref, w_ref, b_ref, out_ref):
    # x_ref:   [TB, 16]      f32  (obs in lanes 0:11, 1.0 at lane 11, zeros after)
    # w1_ref:  [16, 128]     bf16 (layer-1 weights, layer-1 biases in row 11)
    # w_ref:   [3, 128, 128] bf16 (fused layers 2..4)
    # b_ref:   [3, 128]      f32  (biases for layers 2..4)
    # out_ref: [TB, 128]     f32  (mu in lanes 0:3, value in lane 3)
    #
    # Activations stay f32 (v5e VPU has no bf16 ALU); only matmul operands are
    # cast to bf16 so the MXU runs native bf16 with f32 accumulation.
    h = jnp.dot(x_ref[...].astype(jnp.bfloat16), w1_ref[...],
                preferred_element_type=jnp.float32)
    h = jnp.maximum(h, 0.0)
    h = jnp.dot(h.astype(jnp.bfloat16), w_ref[0],
                preferred_element_type=jnp.float32) + b_ref[0:1, :]
    h = jnp.maximum(h, 0.0)
    h = jnp.dot(h.astype(jnp.bfloat16), w_ref[1],
                preferred_element_type=jnp.float32) + b_ref[1:2, :]
    h = jnp.maximum(h, 0.0)
    out_ref[...] = (jnp.dot(h.astype(jnp.bfloat16), w_ref[2],
                            preferred_element_type=jnp.float32) + b_ref[2:3, :])


def pack_params(params, in_pad=IN_PAD):
    """Pack actor+critic weights into fused bf16 block weights (do this ONCE)."""
    (cw1, cb1), (cw2, cb2), (cw3, cb3) = params["critic"]
    (aw1, ab1), (aw2, ab2), (aw3, ab3), (aw4, ab4) = params["actor"]
    H = cw1.shape[1]          # 64
    D = 2 * H                 # 128 packed lanes
    n_in = cw1.shape[0]       # 11
    n_out = aw4.shape[1]      # 3
    assert in_pad >= n_in + 1

    # Layer 1: narrow [in_pad, D] slab; critic in lanes 0:H, actor in H:2H.
    # Row n_in carries the layer-1 biases (matched by the constant-1 input lane).
    w1 = jnp.zeros((in_pad, D), jnp.float32)
    w1 = w1.at[:n_in, :H].set(cw1).at[:n_in, H:].set(aw1)
    w1 = w1.at[n_in, :H].set(cb1[0]).at[n_in, H:].set(ab1[0])

    # Layer 2: block-diagonal critic/actor hidden layers.
    w2 = jnp.zeros((D, D), jnp.float32)
    w2 = w2.at[:H, :H].set(cw2).at[H:, H:].set(aw2)

    # Layer 3: critic branch is an identity passthrough (value computed in L4).
    # NOTE: this relies on the activation being ReLU — relu(c_h2) == c_h2 since
    # c_h2 >= 0 after layer 2's ReLU.  It breaks if the activation changes.
    w3 = jnp.zeros((D, D), jnp.float32)
    w3 = w3.at[:H, :H].set(jnp.eye(H, dtype=jnp.float32)).at[H:, H:].set(aw3)

    # Layer 4: actor head -> lanes 0:n_out (mu), critic head -> lane n_out (value).
    w4 = jnp.zeros((D, D), jnp.float32)
    w4 = w4.at[H:, :n_out].set(aw4).at[:H, n_out].set(cw3[:, 0])

    b = jnp.zeros((3, D), jnp.float32)
    b = b.at[0, :H].set(cb2[0]).at[0, H:].set(ab2[0])
    b = b.at[1, H:].set(ab3[0])
    b = b.at[2, :n_out].set(ab4[0]).at[2, n_out].set(cb3[0, 0])

    return {
        "w1": w1.astype(jnp.bfloat16),                       # [16, 128]
        "w": jnp.stack([w2, w3, w4]).astype(jnp.bfloat16),   # [3, 128, 128]
        "b": b,                                              # [3, 128] f32
        "log_std": params["log_std"],
        "n_in": n_in,
        "n_out": n_out,
    }


@partial(jax.jit, static_argnames=("n_in", "n_out", "tb"))
def actor_critic_forward(x, w1, w, b, log_std, *, n_in, n_out, tb=TILE_B):
    """Fused ActorCritic forward over a (possibly batched-rollout) x.

    Returns (mu, std, value)."""
    B = x.shape[0]
    in_pad = w1.shape[0]
    D = w.shape[-1]

    # Lane-dense input slab: obs in lanes 0:n_in, constant 1 at lane n_in
    # (folds layer-1 biases into the first matmul), zero padding after.
    # Only 16 lanes wide; allow_input_fusion lets XLA fuse this into the
    # kernel's input DMA instead of a separate HBM round trip.
    x_slab = jnp.concatenate(
        [x.astype(jnp.float32),
         jnp.ones((B, 1), jnp.float32),
         jnp.zeros((B, in_pad - n_in - 1), jnp.float32)],
        axis=1)

    B_pad = pl.cdiv(B, tb) * tb
    if B_pad != B:
        x_slab = jnp.concatenate(
            [x_slab, jnp.zeros((B_pad - B, in_pad), jnp.float32)], axis=0)

    out = pl.pallas_call(
        actor_critic_kernel,
        out_shape=jax.ShapeDtypeStruct((B_pad, D), jnp.float32),
        grid_spec=pltpu.PrefetchScalarGridSpec(
            num_scalar_prefetch=0,
            grid=(B_pad // tb,),
            in_specs=[
                # x tiles are pipelined across the batch grid axis.
                pl.BlockSpec((tb, in_pad), lambda i: (i, 0)),
                # Weights/biases: constant block index -> DMA'd once, resident.
                pl.BlockSpec((in_pad, D), lambda i: (0, 0)),
                pl.BlockSpec((3, D, D), lambda i: (0, 0, 0)),
                pl.BlockSpec((3, D), lambda i: (0, 0)),
            ],
            out_specs=pl.BlockSpec((tb, D), lambda i: (i, 0)),
        ),
        compiler_params=pltpu.CompilerParams(
            dimension_semantics=("parallel",),   # v7x: split batch across 2 TCs
            allow_input_fusion=[0],              # fuse x_slab pad into input DMA
        ),
    )(x_slab, w1, w, b)

    mu = out[:B, :n_out]
    value = out[:B, n_out:n_out + 1]
    # std is independent of x: compute exp(log_std) outside the kernel.
    std = jnp.broadcast_to(jnp.exp(log_std), mu.shape)
    return mu, std, value


def init_linear(key, fan_in, fan_out):
    """Deterministic PyTorch-style Linear init; weight returned as [in, out]."""
    kw, kb = jax.random.split(key)
    bound = 1.0 / jnp.sqrt(jnp.float32(fan_in))
    w = jax.random.uniform(kw, (fan_in, fan_out), jnp.float32, -bound, bound)
    b = jax.random.uniform(kb, (1, fan_out), jnp.float32, -bound, bound)
    return w, b


def init_params(key, num_inputs, num_outputs, hidden, std=0.0):
    keys = jax.random.split(key, 8)
    critic = [
        init_linear(keys[0], num_inputs, hidden),
        init_linear(keys[1], hidden, hidden),
        init_linear(keys[2], hidden, 1),
    ]
    actor = [
        init_linear(keys[3], num_inputs, hidden),
        init_linear(keys[4], hidden, hidden),
        init_linear(keys[5], hidden, hidden),
        init_linear(keys[6], hidden, num_outputs),
    ]
    log_std = jnp.ones((1, num_outputs), jnp.float32) * std
    return {"critic": critic, "actor": actor, "log_std": log_std}


def reference_forward(x, params):
    def mlp(h, layers):
        n = len(layers)
        for i, (w, b) in enumerate(layers):
            h = h @ w + b
            if i < n - 1:
                h = jnp.maximum(h, 0.0)
        return h

    value = mlp(x, params["critic"])
    mu = mlp(x, params["actor"])
    std = jnp.broadcast_to(jnp.exp(params["log_std"]), mu.shape)
    return mu, std, value


if __name__ == "__main__":
    key = jax.random.PRNGKey(0)
    k_param, k_x = jax.random.split(key)

    params = init_params(k_param, NUM_INPUTS, NUM_OUTPUTS, HIDDEN, std=0.0)
    packed = pack_params(params)  # pack once, reuse across forward calls

    # Batch a whole rollout (steps x envs) into one call so the weight DMA and
    # the fixed kernel-launch overhead are amortized across many rows.
    B = NUM_ENVS * ROLLOUT_STEPS  # 256 rows -> grid=(2,) with 128-row tiles
    x = jax.random.normal(k_x, (B, NUM_INPUTS), jnp.float32)

    mu, std, value = actor_critic_forward(
        x, packed["w1"], packed["w"], packed["b"], packed["log_std"],
        n_in=packed["n_in"], n_out=packed["n_out"])
    jax.block_until_ready((mu, std, value))

    mu_ref, std_ref, value_ref = reference_forward(x, params)
    assert mu.shape == (B, NUM_OUTPUTS) and value.shape == (B, 1)
    # bf16 weights / operands with f32 accumulation -> relaxed tolerances.
    assert jnp.allclose(mu, mu_ref, atol=2e-2, rtol=2e-2), "mu mismatch"
    assert jnp.allclose(std, std_ref, atol=1e-5), "std mismatch"
    assert jnp.allclose(value, value_ref, atol=2e-2, rtol=2e-2), "value mismatch"

    print("KERNEL_OK")
</pallas_src>

<mosaic_0001>
module attributes {stable_mosaic.version = 11 : i64} {
  func.func @actor_critic_kernel(%arg0: i32, %arg1: memref<128x16xf32, #tpu.memory_space<vmem>>, %arg2: memref<16x128xbf16, #tpu.memory_space<vmem>>, %arg3: memref<3x128x128xbf16, #tpu.memory_space<vmem>>, %arg4: memref<3x128xf32, #tpu.memory_space<vmem>>, %arg5: memref<128x128xf32, #tpu.memory_space<vmem>>) attributes {dimension_semantics = [#tpu.dimension_semantics<parallel>], iteration_bounds = array<i64: 2>, scalar_prefetch = 0 : i64, scratch_operands = 0 : i64, tpu.core_type = #tpu.core_type<tc>, window_params = [{transform_indices = @transform_0, window_bounds = array<i64: 128, 16>}, {pipeline_mode = #tpu.pipeline_mode<synchronous>, transform_indices = @transform_1, window_bounds = array<i64: 16, 128>}, {pipeline_mode = #tpu.pipeline_mode<synchronous>, transform_indices = @transform_2, window_bounds = array<i64: 3, 128, 128>}, {pipeline_mode = #tpu.pipeline_mode<synchronous>, transform_indices = @transform_3, window_bounds = array<i64: 3, 128>}, {transform_indices = @transform_4, window_bounds = array<i64: 128, 128>}]} {
    %c0 = arith.constant 0 : index
    %c0_0 = arith.constant 0 : index
    %0 = vector.load %arg1[%c0, %c0_0] : memref<128x16xf32, #tpu.memory_space<vmem>>, vector<128x16xf32>
    %1 = arith.truncf %0 : vector<128x16xf32> to vector<128x16xbf16>
    %c0_1 = arith.constant 0 : index
    %c0_2 = arith.constant 0 : index
    %2 = vector.load %arg2[%c0_1, %c0_2] : memref<16x128xbf16, #tpu.memory_space<vmem>>, vector<16x128xbf16>
    %cst = arith.constant dense<0.000000e+00> : vector<128x128xf32>
    %3 = tpu.matmul %1, %2, %cst {dimension_numbers = #tpu.dot_dimension_numbers<[1], [0], [0], [1], [0, 0, 1, 1], [], []>} : vector<128x16xbf16>, vector<16x128xbf16>, vector<128x128xf32> -> vector<128x128xf32>
    %cst_3 = arith.constant 0.000000e+00 : f32
    %4 = vector.broadcast %cst_3 : f32 to vector<128x128xf32>
    %5 = arith.maximumf %3, %4 : vector<128x128xf32>
    %6 = arith.truncf %5 : vector<128x128xf32> to vector<128x128xbf16>
    %c0_4 = arith.constant 0 : index
    %c0_5 = arith.constant 0 : index
    %c0_6 = arith.constant 0 : index
    %7 = vector.load %arg3[%c0_4, %c0_5, %c0_6] : memref<3x128x128xbf16, #tpu.memory_space<vmem>>, vector<1x128x128xbf16>
    %8 = vector.shape_cast %7 : vector<1x128x128xbf16> to vector<128x128xbf16>
    %cst_7 = arith.constant dense<0.000000e+00> : vector<128x128xf32>
    %9 = tpu.matmul %6, %8, %cst_7 {dimension_numbers = #tpu.dot_dimension_numbers<[1], [0], [0], [1], [0, 0, 1, 1], [], []>} : vector<128x128xbf16>, vector<128x128xbf16>, vector<128x128xf32> -> vector<128x128xf32>
    %c0_8 = arith.constant 0 : index
    %c0_9 = arith.constant 0 : index
    %10 = vector.load %arg4[%c0_8, %c0_9] : memref<3x128xf32, #tpu.memory_space<vmem>>, vector<1x128xf32>
    %11 = vector.broadcast %10 : vector<1x128xf32> to vector<128x128xf32>
    %12 = arith.addf %9, %11 : vector<128x128xf32>
    %cst_10 = arith.constant 0.000000e+00 : f32
    %13 = vector.broadcast %cst_10 : f32 to vector<128x128xf32>
    %14 = arith.maximumf %12, %13 : vector<128x128xf32>
    %15 = arith.truncf %14 : vector<128x128xf32> to vector<128x128xbf16>
    %c1 = arith.constant 1 : index
    %c0_11 = arith.constant 0 : index
    %c0_12 = arith.constant 0 : index
    %16 = vector.load %arg3[%c1, %c0_11, %c0_12] : memref<3x128x128xbf16, #tpu.memory_space<vmem>>, vector<1x128x128xbf16>
    %17 = vector.shape_cast %16 : vector<1x128x128xbf16> to vector<128x128xbf16>
    %cst_13 = arith.constant dense<0.000000e+00> : vector<128x128xf32>
    %18 = tpu.matmul %15, %17, %cst_13 {dimension_numbers = #tpu.dot_dimension_numbers<[1], [0], [0], [1], [0, 0, 1, 1], [], []>} : vector<128x128xbf16>, vector<128x128xbf16>, vector<128x128xf32> -> vector<128x128xf32>
    %c1_14 = arith.constant 1 : index
    %c0_15 = arith.constant 0 : index
    %19 = vector.load %arg4[%c1_14, %c0_15] : memref<3x128xf32, #tpu.memory_space<vmem>>, vector<1x128xf32>
    %20 = vector.broadcast %19 : vector<1x128xf32> to vector<128x128xf32>
    %21 = arith.addf %18, %20 : vector<128x128xf32>
    %cst_16 = arith.constant 0.000000e+00 : f32
    %22 = vector.broadcast %cst_16 : f32 to vector<128x128xf32>
    %23 = arith.maximumf %21, %22 : vector<128x128xf32>
    %24 = arith.truncf %23 : vector<128x128xf32> to vector<128x128xbf16>
    %c2 = arith.constant 2 : index
    %c0_17 = arith.constant 0 : index
    %c0_18 = arith.constant 0 : index
    %25 = vector.load %arg3[%c2, %c0_17, %c0_18] : memref<3x128x128xbf16, #tpu.memory_space<vmem>>, vector<1x128x128xbf16>
    %26 = vector.shape_cast %25 : vector<1x128x128xbf16> to vector<128x128xbf16>
    %cst_19 = arith.constant dense<0.000000e+00> : vector<128x128xf32>
    %27 = tpu.matmul %24, %26, %cst_19 {dimension_numbers = #tpu.dot_dimension_numbers<[1], [0], [0], [1], [0, 0, 1, 1], [], []>} : vector<128x128xbf16>, vector<128x128xbf16>, vector<128x128xf32> -> vector<128x128xf32>
    %c2_20 = arith.constant 2 : index
    %c0_21 = arith.constant 0 : index
    %28 = vector.load %arg4[%c2_20, %c0_21] : memref<3x128xf32, #tpu.memory_space<vmem>>, vector<1x128xf32>
    %29 = vector.broadcast %28 : vector<1x128xf32> to vector<128x128xf32>
    %30 = arith.addf %27, %29 : vector<128x128xf32>
    %c0_22 = arith.constant 0 : index
    %c0_23 = arith.constant 0 : index
    %31 = vector.load %arg5[%c0_22, %c0_23] : memref<128x128xf32, #tpu.memory_space<vmem>>, vector<128x128xf32>
    tpu.vector_store %arg5[%c0_22, %c0_23], %30 {strides = array<i32>} : memref<128x128xf32, #tpu.memory_space<vmem>>, vector<128x128xf32>,
    return
  }
  func.func @transform_0(%arg0: i32) -> (i32, i32) {
    %c0_i32 = arith.constant 0 : i32
    %c0_i32_0 = arith.constant 0 : i32
    return %arg0, %c0_i32 : i32, i32
  }
  func.func @transform_1(%arg0: i32) -> (i32, i32) {
    %c0_i32 = arith.constant 0 : i32
    %c0_i32_0 = arith.constant 0 : i32
    %c0_i32_1 = arith.constant 0 : i32
    return %c0_i32, %c0_i32_0 : i32, i32
  }
  func.func @transform_2(%arg0: i32) -> (i32, i32, i32) {
    %c0_i32 = arith.constant 0 : i32
    %c0_i32_0 = arith.constant 0 : i32
    %c0_i32_1 = arith.constant 0 : i32
    %c0_i32_2 = arith.constant 0 : i32
    return %c0_i32, %c0_i32_0, %c0_i32_1 : i32, i32, i32
  }
  func.func @transform_3(%arg0: i32) -> (i32, i32) {
    %c0_i32 = arith.constant 0 : i32
    %c0_i32_0 = arith.constant 0 : i32
    %c0_i32_1 = arith.constant 0 : i32
    return %c0_i32, %c0_i32_0 : i32, i32
  }
  func.func @transform_4(%arg0: i32) -> (i32, i32) {
    %c0_i32 = arith.constant 0 : i32
    %c0_i32_0 = arith.constant 0 : i32
    return %arg0, %c0_i32 : i32, i32
  }
}

</mosaic_0001>

<llo_original>
// kernel: actor_critic_forward.1
$region0: #{actor_critic_forward.1}
  #allocation0 [shape = 'u32[]', space=smem, size = 0x4, offset = 0x4, fixed_abs, tag = 'smem constant byte address 0x4 - core index']
  #allocation1 [shape = 'u32[144,128]{1,0:T(1,128)}', space=vmem, size = 0x12000, scoped, tag = 'internal scratch']
  %s0 = inlined_call_operand.vmem [shape: f32[256,16], index: 0, kind: input, shape index: {}]
  %s1 = inlined_call_operand.vmem [shape: bf16[16,128], index: 1, kind: input, shape index: {}]
  %s2 = inlined_call_operand.vmem [shape: bf16[3,128,128], index: 2, kind: input, shape index: {}]
  %s3 = inlined_call_operand.vmem [shape: f32[3,128], index: 3, kind: input, shape index: {}]
  %s4 = inlined_call_operand.vmem [shape: f32[256,128], index: 4, kind: output, shape index: {}]
  %s5 = sld [smem:[#allocation0]]
  $region49: #{actor_critic_forward.1} parent=0
    _
  %s7 = ssub.s32 1, %s5
  %s8 = scalar_select 0, %s7, %s5
  loop: start=0, step=1, limit=4
  $region2: #{actor_critic_forward.1} parent=0 // loop_pre_header
    _
  $region3: #{actor_critic_forward.1} parent=0 // loop_header
    %s10 = sphi 0, %s14
    %p11 = scmp.ge.s32.totalorder %s10, 4
    %s20 = sphi 0, %s22
    %s23 = sphi 0, %s20
    %s24 = sphi 0, %s23
    %s40 = sphi 0, %s24
    %s44 = sphi 0, %s44
    %s46 = sphi 0, %s44
    %s47 = sphi 0, %s46
    %s61 = sphi 0, %s47
    %s65 = sphi 0, %s65
    %s67 = sphi 0, %s65
    %s68 = sphi 0, %s67
    %s82 = sphi 0, %s68
    %s86 = sphi 0, %s86
    %s88 = sphi 0, %s86
    %s89 = sphi 0, %s88
    %s103 = sphi 0, %s89
    %s109 = sphi 0, %s111
    %s112 = sphi 0, %s109
    %s113 = sphi 0, %s112
    %s129 = sphi 0, %s113
  $region4: #{actor_critic_forward.1} parent=0 // loop_header_branch
    %13 = sbr.rel (%p11) target = $region8
  $region5: #{actor_critic_forward.1} parent=0 // loop_body
    %s15 = ssub.s32 %s10, 1
    %s16 = ssub.s32 %s10, 2
    %s17 = sadd.s32 %s10, 1
    %s18 = ssub.s32 %s10, %s17
    %p19 = scmp.eq.s32.totalorder %s18, 0
    %s21 = sadd.s32 %s20, 1
    %s22 = scalar_select %p19, %s20, %s21
    %p25 = pneg %p19
    %p26 = scmp.eq.s32.totalorder %s10, 1
    %p27 = por %p25, %p26
    %p28 = scmp.ne.s32.totalorder %s20, %s23
    %p29 = scmp.eq.s32.totalorder %s10, 0
    %p30 = por %p28, %p29
    %p31 = scmp.ne.s32.totalorder %s20, %s23
    %p32 = scmp.eq.s32.totalorder %s15, 1
    %p33 = por %p31, %p32
    %p34 = scmp.ne.s32.totalorder %s23, %s24
    %p35 = scmp.eq.s32.totalorder %s15, 0
    %p36 = por %p34, %p35
    %p37 = scmp.ne.s32.totalorder %s23, %s24
    %p38 = scmp.eq.s32.totalorder %s16, 1
    %p39 = por %p37, %p38
    %p41 = scmp.ne.s32.totalorder %s24, %s40
    %p42 = scmp.eq.s32.totalorder %s16, 0
    %p43 = por %p41, %p42
    %s45 = sadd.s32 %s44, 1
    %p48 = scmp.eq.s32.totalorder %s10, 1
    %p49 = scmp.ne.s32.totalorder %s44, %s46
    %p50 = scmp.eq.s32.totalorder %s10, 0
    %p51 = por %p49, %p50
    %p52 = scmp.ne.s32.totalorder %s44, %s46
    %p53 = scmp.eq.s32.totalorder %s15, 1
    %p54 = por %p52, %p53
    %p55 = scmp.ne.s32.totalorder %s46, %s47
    %p56 = scmp.eq.s32.totalorder %s15, 0
    %p57 = por %p55, %p56
    %p58 = scmp.ne.s32.totalorder %s46, %s47
    %p59 = scmp.eq.s32.totalorder %s16, 1
    %p60 = por %p58, %p59
    %p62 = scmp.ne.s32.totalorder %s47, %s61
    %p63 = scmp.eq.s32.totalorder %s16, 0
    %p64 = por %p62, %p63
    %s66 = sadd.s32 %s65, 1
    %p69 = scmp.eq.s32.totalorder %s10, 1
    %p70 = scmp.ne.s32.totalorder %s65, %s67
    %p71 = scmp.eq.s32.totalorder %s10, 0
    %p72 = por %p70, %p71
    %p73 = scmp.ne.s32.totalorder %s65, %s67
    %p74 = scmp.eq.s32.totalorder %s15, 1
    %p75 = por %p73, %p74
    %p76 = scmp.ne.s32.totalorder %s67, %s68
    %p77 = scmp.eq.s32.totalorder %s15, 0
    %p78 = por %p76, %p77
    %p79 = scmp.ne.s32.totalorder %s67, %s68
    %p80 = scmp.eq.s32.totalorder %s16, 1
    %p81 = por %p79, %p80
    %p83 = scmp.ne.s32.totalorder %s68, %s82
    %p84 = scmp.eq.s32.totalorder %s16, 0
    %p85 = por %p83, %p84
    %s87 = sadd.s32 %s86, 1
    %p90 = scmp.eq.s32.totalorder %s10, 1
    %p91 = scmp.ne.s32.totalorder %s86, %s88
    %p92 = scmp.eq.s32.totalorder %s10, 0
    %p93 = por %p91, %p92
    %p94 = scmp.ne.s32.totalorder %s86, %s88
    %p95 = scmp.eq.s32.totalorder %s15, 1
    %p96 = por %p94, %p95
    %p97 = scmp.ne.s32.totalorder %s88, %s89
    %p98 = scmp.eq.s32.totalorder %s15, 0
    %p99 = por %p97, %p98
    %p100 = scmp.ne.s32.totalorder %s88, %s89
    %p101 = scmp.eq.s32.totalorder %s16, 1
    %p102 = por %p100, %p101
    %p104 = scmp.ne.s32.totalorder %s89, %s103
    %p105 = scmp.eq.s32.totalorder %s16, 0
    %p106 = por %p104, %p105
    %s107 = ssub.s32 %s10, %s17
    %p108 = scmp.eq.s32.totalorder %s107, 0
    %s110 = sadd.s32 %s109, 1
    %s111 = scalar_select %p108, %s109, %s110
    %p114 = pneg %p108
    %p115 = scmp.eq.s32.totalorder %s10, 1
    %p116 = por %p114, %p115
    %p117 = scmp.ne.s32.totalorder %s109, %s112
    %p118 = scmp.eq.s32.totalorder %s10, 0
    %p119 = por %p117, %p118
    %p120 = scmp.ne.s32.totalorder %s109, %s112
    %p121 = scmp.eq.s32.totalorder %s15, 1
    %p122 = por %p120, %p121
    %p123 = scmp.ne.s32.totalorder %s112, %s113
    %p124 = scmp.eq.s32.totalorder %s15, 0
    %p125 = por %p123, %p124
    %p126 = scmp.ne.s32.totalorder %s112, %s113
    %p127 = scmp.eq.s32.totalorder %s16, 1
    %p128 = por %p126, %p127
    %p130 = scmp.ne.s32.totalorder %s113, %s129
    %p131 = scmp.eq.s32.totalorder %s16, 0
    %p132 = por %p130, %p131
    %p133 = scmp.le.s32.totalorder 1, %s10
    %p134 = scmp.lt.s32.totalorder %s10, 3
    %p135 = pnand %p133, %p134
    %p136 = pneg %p135
    // Predicated region
    $region9: #{actor_critic_forward.1} parent=5 // pred_check
      _
    $region10: #{actor_critic_forward.1} parent=5 // pred_check_branch
      %138 = sbr.rel (%p135) target = $region12
    $region11: #{actor_critic_forward.1} parent=5 // pred_region
      %s139 = ssub.s32 %s10, 1
      // Predicated region
      $region13: #{actor_critic_forward.1} parent=11 // pred_check
        %p140 = pneg %p57
      $region14: #{actor_critic_forward.1} parent=11 // pred_check_branch
        %142 = sbr.rel (%p140) target = $region16
      $region15: #{actor_critic_forward.1} parent=11 // pred_region
        _
      $region16: #{actor_critic_forward.1} parent=11 // pred_fallthru
        _
      // Predicated region
      $region17: #{actor_critic_forward.1} parent=11 // pred_check
        %p143 = pneg %p78
      $region18: #{actor_critic_forward.1} parent=11 // pred_check_branch
        %145 = sbr.rel (%p143) target = $region20
      $region19: #{actor_critic_forward.1} parent=11 // pred_region
        _
      $region20: #{actor_critic_forward.1} parent=11 // pred_fallthru
        _
      // Predicated region
      $region21: #{actor_critic_forward.1} parent=11 // pred_check
        %p146 = pneg %p99
      $region22: #{actor_critic_forward.1} parent=11 // pred_check_branch
        %148 = sbr.rel (%p146) target = $region24
      $region23: #{actor_critic_forward.1} parent=11 // pred_region
        _
      $region24: #{actor_critic_forward.1} parent=11 // pred_fallthru
        _
    $region12: #{actor_critic_forward.1} parent=5 // pred_fallthru
      _
    %p149 = scmp.lt.s32.totalorder %s10, 2
    // Predicated region
    $region25: #{actor_critic_forward.1} parent=5 // pred_check
      %p150 = pneg %p149
    $region26: #{actor_critic_forward.1} parent=5 // pred_check_branch
      %152 = sbr.rel (%p150) target = $region28
    $region27: #{actor_critic_forward.1} parent=5 // pred_region
      // Predicated region
      $region29: #{actor_critic_forward.1} parent=27 // pred_check
        %p153 = pneg %p30
      $region30: #{actor_critic_forward.1} parent=27 // pred_check_branch
        %155 = sbr.rel (%p153) target = $region32
      $region31: #{actor_critic_forward.1} parent=27 // pred_region
        %s156 = smul.u32 16, %s10
        %p157 = scmp.lt.s32.totalorder %s156, 31
        %s158 = scalar_select %p157, %s156, 31
        %s159 = smul.addr %s158, 8
        %s160 = scalar_lea.vmem %s0, %s159
        %s161 = smul.u32 16, %s10
      $region32: #{actor_critic_forward.1} parent=27 // pred_fallthru
        _
    $region28: #{actor_critic_forward.1} parent=5 // pred_fallthru
      _
    %p162 = scmp.le.s32.totalorder 1, %s10
    %p163 = scmp.lt.s32.totalorder %s10, 3
    %p164 = pnand %p162, %p163
    %p165 = pneg %p164
    // Predicated region
    $region33: #{actor_critic_forward.1} parent=5 // pred_check
      _
    $region34: #{actor_critic_forward.1} parent=5 // pred_check_branch
      %167 = sbr.rel (%p164) target = $region36
    $region35: #{actor_critic_forward.1} parent=5 // pred_region
      %s168 = ssub.s32 %s10, 1
      %s169 = smul.u32 16, %s15
      %p170 = scmp.lt.s32.totalorder %s169, 31
      %s171 = scalar_select %p170, %s169, 31
      %s172 = smul.addr %s171, 8
      %s173 = scalar_lea.vmem %s0, %s172
      %p174 = pneg %p36
      %p175 = pneg %p33
      %p176 = pneg %p57
      %p177 = pneg %p54
      %p178 = pneg %p78
      %p179 = pneg %p75
      %p180 = pneg %p99
      %p181 = pneg %p96
      %p182 = pneg %p125
      %p183 = pneg %p122
      %s184 = smul.u32 16, %s15
      %p185 = scmp.lt.s32.totalorder %s184, 31
      %s186 = scalar_select %p185, %s184, 31
      %s187 = smul.addr %s186, 8
      %s188 = scalar_lea.vmem %s4, %s187
      %s189 = smul.u32 16, %s15
      %p190 = scmp.lt.s32.totalorder %s189, 31
      %s191 = scalar_select %p190, %s189, 31
      %s192 = smul.addr %s191, 8
      %s193 = scalar_lea.vmem %s0, %s192
      %s194 = smul.u32 16, %s15
      %s195 = smul.u32 16, %s15
      %p196 = scmp.lt.s32.totalorder %s195, 31
      %s197 = scalar_select %p196, %s195, 31
      %s198 = smul.addr %s197, 8
      %s199 = scalar_lea.vmem %s4, %s198
      %s200 = smul.u32 16, %s15
      %v202 = vld [vmem:[%s193] sm:$0xff]
      %v203 = vld [vmem:[%s193 + $0x8] sm:$0xff]
      %v204 = vld [vmem:[%s193 + $0x10] sm:$0xff]
      %v205 = vld [vmem:[%s193 + $0x18] sm:$0xff]
      %v206 = vld [vmem:[%s193 + $0x20] sm:$0xff]
      %v207 = vld [vmem:[%s193 + $0x28] sm:$0xff]
      %v208 = vld [vmem:[%s193 + $0x30] sm:$0xff]
      %v209 = vld [vmem:[%s193 + $0x38] sm:$0xff]
      %v210 = vld [vmem:[%s193 + $0x40] sm:$0xff]
      %v211 = vld [vmem:[%s193 + $0x48] sm:$0xff]
      %v212 = vld [vmem:[%s193 + $0x50] sm:$0xff]
      %v213 = vld [vmem:[%s193 + $0x58] sm:$0xff]
      %v214 = vld [vmem:[%s193 + $0x60] sm:$0xff]
      %v215 = vld [vmem:[%s193 + $0x68] sm:$0xff]
      %v216 = vld [vmem:[%s193 + $0x70] sm:$0xff]
      %v217 = vld [vmem:[%s193 + $0x78] sm:$0xff]
      %v218 = vpack.c.bf16 %v203, %v202
      %v219 = vpack.c.bf16 %v205, %v204
      %v220 = vpack.c.bf16 %v207, %v206
      %v221 = vpack.c.bf16 %v209, %v208
      %v222 = vpack.c.bf16 %v211, %v210
      %v223 = vpack.c.bf16 %v213, %v212
      %v224 = vpack.c.bf16 %v215, %v214
      %v225 = vpack.c.bf16 %v217, %v216
      %v226 = vld [vmem:[%s1] sm:$0xf]
      %v227 = vld [vmem:[%s1 + $0x4] sm:$0xf]
      %v230 = vunpack.c.l.b16 %v226
      %v231 = vunpack.c.l.b16 %v227
      %v232 = vpack.c.b16 %v231, %v230
      %vm234 = vcmask 130048
      %v236 = vsel %vm234, %v218, 0
      %v239 = vsel %vm234, %v219, 0
      %v242 = vsel %vm234, %v220, 0
      %v245 = vsel %vm234, %v221, 0
      %v248 = vsel %vm234, %v222, 0
      %v251 = vsel %vm234, %v223, 0
      %v254 = vsel %vm234, %v224, 0
      %v257 = vsel %vm234, %v225, 0
      %259 = vmatprep.subr.bf16.mxu0 0
      %260 = vmatpush1.bf16.msra.mxu0 %v232
      %261 = vmatprep.subr.bf16.mxu0 0
      %262 = vmatpush1.bf16.msra.mxu0 0
      %263 = vmatprep.subr.bf16.mxu0 0
      %264 = vmatpush1.bf16.msra.mxu0 0
      %265 = vmatprep.subr.bf16.mxu0 0
      %266 = vmatpush1.bf16.msra.mxu0 0
      %267 = vmatprep.subr.bf16.mxu0 0
      %268 = vmatpush1.bf16.msra.mxu0 0
      %269 = vmatprep.subr.bf16.mxu0 0
      %270 = vmatpush1.bf16.msra.mxu0 0
      %271 = vmatprep.subr.bf16.mxu0 0
      %272 = vmatpush1.bf16.msra.mxu0 0
      %273 = vmatprep.subr.bf16.mxu0 0
      %274 = vmatpush1.bf16.msra.mxu0 0
      %275 = vmatprep.subr.bf16.mxu0 0
      %276 = vmatpush1.bf16.msra.mxu0 0
      %277 = vmatprep.subr.bf16.mxu0 0
      %278 = vmatpush1.bf16.msra.mxu0 0
      %279 = vmatprep.subr.bf16.mxu0 0
      %280 = vmatpush1.bf16.msra.mxu0 0
      %281 = vmatprep.subr.bf16.mxu0 0
      %282 = vmatpush1.bf16.msra.mxu0 0
      %283 = vmatprep.subr.bf16.mxu0 0
      %284 = vmatpush1.bf16.msra.mxu0 0
      %285 = vmatprep.subr.bf16.mxu0 0
      %286 = vmatpush1.bf16.msra.mxu0 0
      %287 = vmatprep.subr.bf16.mxu0 0
      %288 = vmatpush1.bf16.msra.mxu0 0
      %289 = vmatprep.subr.bf16.mxu0 0
      %290 = vmatpush1.bf16.msra.mxu0 0
      %291 = vmatprep.mubr.bf16.mxu0 0
      %292 = vmatmul.mubr.bf16.gmra.mrb[0].mxu0 %v236
      %v293 = vpop.f32.mrb[0].mxu0
      %v294 = vadd.f32 0.0, %v293
      %v295 = vpop.f32.mrb[0].mxu0
      %v296 = vpop.f32.mrb[0].mxu0
      %v297 = vadd.f32 0.0, %v296
      %v298 = vpop.f32.mrb[0].mxu0
      %299 = vmatprep.mubr.bf16.mxu0 0
      %300 = vmatmul.mubr.bf16.gmra.mrb[0].mxu0 %v239
      %v301 = vpop.f32.mrb[0].mxu0
      %v302 = vadd.f32 0.0, %v301
      %v303 = vpop.f32.mrb[0].mxu0
      %v304 = vpop.f32.mrb[0].mxu0
      %v305 = vadd.f32 0.0, %v304
      %v306 = vpop.f32.mrb[0].mxu0
      %307 = vmatprep.mubr.bf16.mxu0 0
      %308 = vmatmul.mubr.bf16.gmra.mrb[0].mxu0 %v242
      %v309 = vpop.f32.mrb[0].mxu0
      %v310 = vadd.f32 0.0, %v309
      %v311 = vpop.f32.mrb[0].mxu0
      %v312 = vpop.f32.mrb[0].mxu0
      %v313 = vadd.f32 0.0, %v312
      %v314 = vpop.f32.mrb[0].mxu0
      %315 = vmatprep.mubr.bf16.mxu0 0
      %316 = vmatmul.mubr.bf16.gmra.mrb[0].mxu0 %v245
      %v317 = vpop.f32.mrb[0].mxu0
      %v318 = vadd.f32 0.0, %v317
      %v319 = vpop.f32.mrb[0].mxu0
      %v320 = vpop.f32.mrb[0].mxu0
      %v321 = vadd.f32 0.0, %v320
      %v322 = vpop.f32.mrb[0].mxu0
      %323 = vmatprep.mubr.bf16.mxu0 0
      %324 = vmatmul.mubr.bf16.gmra.mrb[0].mxu0 %v248
      %v325 = vpop.f32.mrb[0].mxu0
      %v326 = vadd.f32 0.0, %v325
      %v327 = vpop.f32.mrb[0].mxu0
      %v328 = vpop.f32.mrb[0].mxu0
      %v329 = vadd.f32 0.0, %v328
      %v330 = vpop.f32.mrb[0].mxu0
      %331 = vmatprep.mubr.bf16.mxu0 0
      %332 = vmatmul.mubr.bf16.gmra.mrb[0].mxu0 %v251
      %v333 = vpop.f32.mrb[0].mxu0
      %v334 = vadd.f32 0.0, %v333
      %v335 = vpop.f32.mrb[0].mxu0
      %v336 = vpop.f32.mrb[0].mxu0
      %v337 = vadd.f32 0.0, %v336
      %v338 = vpop.f32.mrb[0].mxu0
      %339 = vmatprep.mubr.bf16.mxu0 0
      %340 = vmatmul.mubr.bf16.gmra.mrb[0].mxu0 %v254
      %v341 = vpop.f32.mrb[0].mxu0
      %v342 = vadd.f32 0.0, %v341
      %v343 = vpop.f32.mrb[0].mxu0
      %v344 = vpop.f32.mrb[0].mxu0
      %v345 = vadd.f32 0.0, %v344
      %v346 = vpop.f32.mrb[0].mxu0
      %347 = vmatprep.mubr.bf16.mxu0 0
      %348 = vmatmul.mubr.bf16.gmra.mrb[0].mxu0 %v257
      %v349 = vpop.f32.mrb[0].mxu0
      %v350 = vadd.f32 0.0, %v349
      %v351 = vpop.f32.mrb[0].mxu0
      %v352 = vpop.f32.mrb[0].mxu0
      %v353 = vadd.f32 0.0, %v352
      %v354 = vpop.f32.mrb[0].mxu0
      %355 = vdwg.mxu0
      %v356 = vmax.f32 %v294, 0.0
      %v357 = vmax.f32 %v297, 0.0
      %v358 = vmax.f32 %v302, 0.0
      %v359 = vmax.f32 %v305, 0.0
      %v360 = vmax.f32 %v310, 0.0
      %v361 = vmax.f32 %v313, 0.0
      %v362 = vmax.f32 %v318, 0.0
      %v363 = vmax.f32 %v321, 0.0
      %v364 = vmax.f32 %v326, 0.0
      %v365 = vmax.f32 %v329, 0.0
      %v366 = vmax.f32 %v334, 0.0
      %v367 = vmax.f32 %v337, 0.0
      %v368 = vmax.f32 %v342, 0.0
      %v369 = vmax.f32 %v345, 0.0
      %v370 = vmax.f32 %v350, 0.0
      %v371 = vmax.f32 %v353, 0.0
      %v372 = vpack.c.bf16 %v357, %v356
      %v373 = vpack.c.bf16 %v359, %v358
      %v374 = vpack.c.bf16 %v361, %v360
      %v375 = vpack.c.bf16 %v363, %v362
      %v376 = vpack.c.bf16 %v365, %v364
      %v377 = vpack.c.bf16 %v367, %v366
      %v378 = vpack.c.bf16 %v369, %v368
      %v379 = vpack.c.bf16 %v371, %v370
      %v380 = vld [vmem:[%s2] sm:$0xf]
      %v381 = vld [vmem:[%s2 + $0x4] sm:$0xf]
      %v382 = vld [vmem:[%s2 + $0x8] sm:$0xf]
      %v383 = vld [vmem:[%s2 + $0xc] sm:$0xf]
      %v384 = vld [vmem:[%s2 + $0x10] sm:$0xf]
      %v385 = vld [vmem:[%s2 + $0x14] sm:$0xf]
      %v386 = vld [vmem:[%s2 + $0x18] sm:$0xf]
      %v387 = vld [vmem:[%s2 + $0x1c] sm:$0xf]
      %v388 = vld [vmem:[%s2 + $0x20] sm:$0xf]
      %v389 = vld [vmem:[%s2 + $0x24] sm:$0xf]
      %v390 = vld [vmem:[%s2 + $0x28] sm:$0xf]
      %v391 = vld [vmem:[%s2 + $0x2c] sm:$0xf]
      %v392 = vld [vmem:[%s2 + $0x30] sm:$0xf]
      %v393 = vld [vmem:[%s2 + $0x34] sm:$0xf]
      %v394 = vld [vmem:[%s2 + $0x38] sm:$0xf]
      %v395 = vld [vmem:[%s2 + $0x3c] sm:$0xf]
      %v396 = vld [vmem:[%s3] sm:$0x1]
      %v397 = vlaneseq
      %v398 = vshrl.u32 %v397, 7
      %v399 = vsub.s32 0, %v398
      %v400 = vrot.slane %v396, %v399
      %v417 = vunpack.c.l.b16 %v380
      %v418 = vunpack.c.l.b16 %v381
      %v419 = vunpack.c.l.b16 %v382
      %v420 = vunpack.c.l.b16 %v383
      %v421 = vunpack.c.l.b16 %v384
      %v422 = vunpack.c.l.b16 %v385
      %v423 = vunpack.c.l.b16 %v386
      %v424 = vunpack.c.l.b16 %v387
      %v425 = vunpack.c.l.b16 %v388
      %v426 = vunpack.c.l.b16 %v389
      %v427 = vunpack.c.l.b16 %v390
      %v428 = vunpack.c.l.b16 %v391
      %v429 = vunpack.c.l.b16 %v392
      %v430 = vunpack.c.l.b16 %v393
      %v431 = vunpack.c.l.b16 %v394
      %v432 = vunpack.c.l.b16 %v395
      %v433 = vpack.c.b16 %v418, %v417
      %v434 = vpack.c.b16 %v420, %v419
      %v435 = vpack.c.b16 %v422, %v421
      %v436 = vpack.c.b16 %v424, %v423
      %v437 = vpack.c.b16 %v426, %v425
      %v438 = vpack.c.b16 %v428, %v427
      %v439 = vpack.c.b16 %v430, %v429
      %v440 = vpack.c.b16 %v432, %v431
      %449 = vmatprep.subr.bf16.mxu0 0
      %450 = vmatpush1.bf16.msra.mxu0 %v433
      %451 = vmatprep.subr.bf16.mxu0 0
      %452 = vmatpush1.bf16.msra.mxu0 %v434
      %453 = vmatprep.subr.bf16.mxu0 0
      %454 = vmatpush1.bf16.msra.mxu0 %v435
      %455 = vmatprep.subr.bf16.mxu0 0
      %456 = vmatpush1.bf16.msra.mxu0 %v436
      %457 = vmatprep.subr.bf16.mxu0 0
      %458 = vmatpush1.bf16.msra.mxu0 %v437
      %459 = vmatprep.subr.bf16.mxu0 0
      %460 = vmatpush1.bf16.msra.mxu0 %v438
      %461 = vmatprep.subr.bf16.mxu0 0
      %462 = vmatpush1.bf16.msra.mxu0 %v439
      %463 = vmatprep.subr.bf16.mxu0 0
      %464 = vmatpush1.bf16.msra.mxu0 %v440
      %465 = vmatprep.subr.bf16.mxu0 0
      %466 = vmatpush1.bf16.msra.mxu0 0
      %467 = vmatprep.subr.bf16.mxu0 0
      %468 = vmatpush1.bf16.msra.mxu0 0
      %469 = vmatprep.subr.bf16.mxu0 0
      %470 = vmatpush1.bf16.msra.mxu0 0
      %471 = vmatprep.subr.bf16.mxu0 0
      %472 = vmatpush1.bf16.msra.mxu0 0
      %473 = vmatprep.subr.bf16.mxu0 0
      %474 = vmatpush1.bf16.msra.mxu0 0
      %475 = vmatprep.subr.bf16.mxu0 0
      %476 = vmatpush1.bf16.msra.mxu0 0
      %477 = vmatprep.subr.bf16.mxu0 0
      %478 = vmatpush1.bf16.msra.mxu0 0
      %479 = vmatprep.subr.bf16.mxu0 0
      %480 = vmatpush1.bf16.msra.mxu0 0
      %481 = vmatprep.mubr.bf16.mxu0 0
      %482 = vmatmul.mubr.bf16.gmra.mrb[0].mxu0 %v372
      %v483 = vpop.f32.mrb[0].mxu0
      %v484 = vadd.f32 %v400, %v483
      %v485 = vpop.f32.mrb[0].mxu0
      %v486 = vpop.f32.mrb[0].mxu0
      %v487 = vadd.f32 %v400, %v486
      %v488 = vpop.f32.mrb[0].mxu0
      %489 = vmatprep.mubr.bf16.mxu0 0
      %490 = vmatmul.mubr.bf16.gmra.mrb[0].mxu0 %v373
      %v491 = vpop.f32.mrb[0].mxu0
      %v492 = vadd.f32 %v400, %v491
      %v493 = vpop.f32.mrb[0].mxu0
      %v494 = vpop.f32.mrb[0].mxu0
      %v495 = vadd.f32 %v400, %v494
      %v496 = vpop.f32.mrb[0].mxu0
      %497 = vmatprep.mubr.bf16.mxu0 0
      %498 = vmatmul.mubr.bf16.gmra.mrb[0].mxu0 %v374
      %v499 = vpop.f32.mrb[0].mxu0
      %v500 = vadd.f32 %v400, %v499
      %v501 = vpop.f32.mrb[0].mxu0
      %v502 = vpop.f32.mrb[0].mxu0
      %v503 = vadd.f32 %v400, %v502
      %v504 = vpop.f32.mrb[0].mxu0
      %505 = vmatprep.mubr.bf16.mxu0 0
      %506 = vmatmul.mubr.bf16.gmra.mrb[0].mxu0 %v375
      %v507 = vpop.f32.mrb[0].mxu0
      %v508 = vadd.f32 %v400, %v507
      %v509 = vpop.f32.mrb[0].mxu0
      %v510 = vpop.f32.mrb[0].mxu0
      %v511 = vadd.f32 %v400, %v510
      %v512 = vpop.f32.mrb[0].mxu0
      %513 = vmatprep.mubr.bf16.mxu0 0
      %514 = vmatmul.mubr.bf16.gmra.mrb[0].mxu0 %v376
      %v515 = vpop.f32.mrb[0].mxu0
      %v516 = vadd.f32 %v400, %v515
      %v517 = vpop.f32.mrb[0].mxu0
      %v518 = vpop.f32.mrb[0].mxu0
      %v519 = vadd.f32 %v400, %v518
      %v520 = vpop.f32.mrb[0].mxu0
      %521 = vmatprep.mubr.bf16.mxu0 0
      %522 = vmatmul.mubr.bf16.gmra.mrb[0].mxu0 %v377
      %v523 = vpop.f32.mrb[0].mxu0
      %v524 = vadd.f32 %v400, %v523
      %v525 = vpop.f32.mrb[0].mxu0
      %v526 = vpop.f32.mrb[0].mxu0
      %v527 = vadd.f32 %v400, %v526
      %v528 = vpop.f32.mrb[0].mxu0
      %529 = vmatprep.mubr.bf16.mxu0 0
      %530 = vmatmul.mubr.bf16.gmra.mrb[0].mxu0 %v378
      %v531 = vpop.f32.mrb[0].mxu0
      %v532 = vadd.f32 %v400, %v531
      %v533 = vpop.f32.mrb[0].mxu0
      %v534 = vpop.f32.mrb[0].mxu0
      %v535 = vadd.f32 %v400, %v534
      %v536 = vpop.f32.mrb[0].mxu0
      %537 = vmatprep.mubr.bf16.mxu0 0
      %538 = vmatmul.mubr.bf16.gmra.mrb[0].mxu0 %v379
      %v539 = vpop.f32.mrb[0].mxu0
      %v540 = vadd.f32 %v400, %v539
      %v541 = vpop.f32.mrb[0].mxu0
      %v542 = vpop.f32.mrb[0].mxu0
      %v543 = vadd.f32 %v400, %v542
      %v544 = vpop.f32.mrb[0].mxu0
      %545 = vdwg.mxu0
      %v546 = vmax.f32 %v484, 0.0
      %v547 = vmax.f32 %v487, 0.0
      %v548 = vmax.f32 %v492, 0.0
      %v549 = vmax.f32 %v495, 0.0
      %v550 = vmax.f32 %v500, 0.0
      %v551 = vmax.f32 %v503, 0.0
      %v552 = vmax.f32 %v508, 0.0
      %v553 = vmax.f32 %v511, 0.0
      %v554 = vmax.f32 %v516, 0.0
      %v555 = vmax.f32 %v519, 0.0
      %v556 = vmax.f32 %v524, 0.0
      %v557 = vmax.f32 %v527, 0.0
      %v558 = vmax.f32 %v532, 0.0
      %v559 = vmax.f32 %v535, 0.0
      %v560 = vmax.f32 %v540, 0.0
      %v561 = vmax.f32 %v543, 0.0
      %v562 = vpack.c.bf16 %v547, %v546
      %v563 = vpack.c.bf16 %v549, %v548
      %v564 = vpack.c.bf16 %v551, %v550
      %v565 = vpack.c.bf16 %v553, %v552
      %v566 = vpack.c.bf16 %v555, %v554
      %v567 = vpack.c.bf16 %v557, %v556
      %v568 = vpack.c.bf16 %v559, %v558
      %v569 = vpack.c.bf16 %v561, %v560
      %s570 = scalar_lea.vmem %s2, 64
      %v571 = vld [vmem:[%s570] sm:$0xf]
      %v572 = vld [vmem:[%s570 + $0x4] sm:$0xf]
      %v573 = vld [vmem:[%s570 + $0x8] sm:$0xf]
      %v574 = vld [vmem:[%s570 + $0xc] sm:$0xf]
      %v575 = vld [vmem:[%s570 + $0x10] sm:$0xf]
      %v576 = vld [vmem:[%s570 + $0x14] sm:$0xf]
      %v577 = vld [vmem:[%s570 + $0x18] sm:$0xf]
      %v578 = vld [vmem:[%s570 + $0x1c] sm:$0xf]
      %v579 = vld [vmem:[%s570 + $0x20] sm:$0xf]
      %v580 = vld [vmem:[%s570 + $0x24] sm:$0xf]
      %v581 = vld [vmem:[%s570 + $0x28] sm:$0xf]
      %v582 = vld [vmem:[%s570 + $0x2c] sm:$0xf]
      %v583 = vld [vmem:[%s570 + $0x30] sm:$0xf]
      %v584 = vld [vmem:[%s570 + $0x34] sm:$0xf]
      %v585 = vld [vmem:[%s570 + $0x38] sm:$0xf]
      %v586 = vld [vmem:[%s570 + $0x3c] sm:$0xf]
      %v587 = vld [vmem:[%s3 + $0x1] sm:$0x1]
      %v588 = vlaneseq
      %v589 = vshrl.u32 %v588, 7
      %v590 = vsub.s32 0, %v589
      %v591 = vrot.slane %v587, %v590
      %v608 = vunpack.c.l.b16 %v571
      %v609 = vunpack.c.l.b16 %v572
      %v610 = vunpack.c.l.b16 %v573
      %v611 = vunpack.c.l.b16 %v574
      %v612 = vunpack.c.l.b16 %v575
      %v613 = vunpack.c.l.b16 %v576
      %v614 = vunpack.c.l.b16 %v577
      %v615 = vunpack.c.l.b16 %v578
      %v616 = vunpack.c.l.b16 %v579
      %v617 = vunpack.c.l.b16 %v580
      %v618 = vunpack.c.l.b16 %v581
      %v619 = vunpack.c.l.b16 %v582
      %v620 = vunpack.c.l.b16 %v583
      %v621 = vunpack.c.l.b16 %v584
      %v622 = vunpack.c.l.b16 %v585
      %v623 = vunpack.c.l.b16 %v586
      %v624 = vpack.c.b16 %v609, %v608
      %v625 = vpack.c.b16 %v611, %v610
      %v626 = vpack.c.b16 %v613, %v612
      %v627 = vpack.c.b16 %v615, %v614
      %v628 = vpack.c.b16 %v617, %v616
      %v629 = vpack.c.b16 %v619, %v618
      %v630 = vpack.c.b16 %v621, %v620
      %v631 = vpack.c.b16 %v623, %v622
      %640 = vmatprep.subr.bf16.mxu0 0
      %641 = vmatpush1.bf16.msra.mxu0 %v624
      %642 = vmatprep.subr.bf16.mxu0 0
      %643 = vmatpush1.bf16.msra.mxu0 %v625
      %644 = vmatprep.subr.bf16.mxu0 0
      %645 = vmatpush1.bf16.msra.mxu0 %v626
      %646 = vmatprep.subr.bf16.mxu0 0
      %647 = vmatpush1.bf16.msra.mxu0 %v627
      %648 = vmatprep.subr.bf16.mxu0 0
      %649 = vmatpush1.bf16.msra.mxu0 %v628
      %650 = vmatprep.subr.bf16.mxu0 0
      %651 = vmatpush1.bf16.msra.mxu0 %v629
      %652 = vmatprep.subr.bf16.mxu0 0
      %653 = vmatpush1.bf16.msra.mxu0 %v630
      %654 = vmatprep.subr.bf16.mxu0 0
      %655 = vmatpush1.bf16.msra.mxu0 %v631
      %656 = vmatprep.subr.bf16.mxu0 0
      %657 = vmatpush1.bf16.msra.mxu0 0
      %658 = vmatprep.subr.bf16.mxu0 0
      %659 = vmatpush1.bf16.msra.mxu0 0
      %660 = vmatprep.subr.bf16.mxu0 0
      %661 = vmatpush1.bf16.msra.mxu0 0
      %662 = vmatprep.subr.bf16.mxu0 0
      %663 = vmatpush1.bf16.msra.mxu0 0
      %664 = vmatprep.subr.bf16.mxu0 0
      %665 = vmatpush1.bf16.msra.mxu0 0
      %666 = vmatprep.subr.bf16.mxu0 0
      %667 = vmatpush1.bf16.msra.mxu0 0
      %668 = vmatprep.subr.bf16.mxu0 0
      %669 = vmatpush1.bf16.msra.mxu0 0
      %670 = vmatprep.subr.bf16.mxu0 0
      %671 = vmatpush1.bf16.msra.mxu0 0
      %672 = vmatprep.mubr.bf16.mxu0 0
      %673 = vmatmul.mubr.bf16.gmra.mrb[0].mxu0 %v562
      %v674 = vpop.f32.mrb[0].mxu0
      %v675 = vadd.f32 %v591, %v674
      %v676 = vpop.f32.mrb[0].mxu0
      %v677 = vpop.f32.mrb[0].mxu0
      %v678 = vadd.f32 %v591, %v677
      %v679 = vpop.f32.mrb[0].mxu0
      %680 = vmatprep.mubr.bf16.mxu0 0
      %681 = vmatmul.mubr.bf16.gmra.mrb[0].mxu0 %v563
      %v682 = vpop.f32.mrb[0].mxu0
      %v683 = vadd.f32 %v591, %v682
      %v684 = vpop.f32.mrb[0].mxu0
      %v685 = vpop.f32.mrb[0].mxu0
      %v686 = vadd.f32 %v591, %v685
      %v687 = vpop.f32.mrb[0].mxu0
      %688 = vmatprep.mubr.bf16.mxu0 0
      %689 = vmatmul.mubr.bf16.gmra.mrb[0].mxu0 %v564
      %v690 = vpop.f32.mrb[0].mxu0
      %v691 = vadd.f32 %v591, %v690
      %v692 = vpop.f32.mrb[0].mxu0
      %v693 = vpop.f32.mrb[0].mxu0
      %v694 = vadd.f32 %v591, %v693
      %v695 = vpop.f32.mrb[0].mxu0
      %696 = vmatprep.mubr.bf16.mxu0 0
      %697 = vmatmul.mubr.bf16.gmra.mrb[0].mxu0 %v565
      %v698 = vpop.f32.mrb[0].mxu0
      %v699 = vadd.f32 %v591, %v698
      %v700 = vpop.f32.mrb[0].mxu0
      %v701 = vpop.f32.mrb[0].mxu0
      %v702 = vadd.f32 %v591, %v701
      %v703 = vpop.f32.mrb[0].mxu0
      %704 = vmatprep.mubr.bf16.mxu0 0
      %705 = vmatmul.mubr.bf16.gmra.mrb[0].mxu0 %v566
      %v706 = vpop.f32.mrb[0].mxu0
      %v707 = vadd.f32 %v591, %v706
      %v708 = vpop.f32.mrb[0].mxu0
      %v709 = vpop.f32.mrb[0].mxu0
      %v710 = vadd.f32 %v591, %v709
      %v711 = vpop.f32.mrb[0].mxu0
      %712 = vmatprep.mubr.bf16.mxu0 0
      %713 = vmatmul.mubr.bf16.gmra.mrb[0].mxu0 %v567
      %v714 = vpop.f32.mrb[0].mxu0
      %v715 = vadd.f32 %v591, %v714
      %v716 = vpop.f32.mrb[0].mxu0
      %v717 = vpop.f32.mrb[0].mxu0
      %v718 = vadd.f32 %v591, %v717
      %v719 = vpop.f32.mrb[0].mxu0
      %720 = vmatprep.mubr.bf16.mxu0 0
      %721 = vmatmul.mubr.bf16.gmra.mrb[0].mxu0 %v568
      %v722 = vpop.f32.mrb[0].mxu0
      %v723 = vadd.f32 %v591, %v722
      %v724 = vpop.f32.mrb[0].mxu0
      %v725 = vpop.f32.mrb[0].mxu0
      %v726 = vadd.f32 %v591, %v725
      %v727 = vpop.f32.mrb[0].mxu0
      %728 = vmatprep.mubr.bf16.mxu0 0
      %729 = vmatmul.mubr.bf16.gmra.mrb[0].mxu0 %v569
      %v730 = vpop.f32.mrb[0].mxu0
      %v731 = vadd.f32 %v591, %v730
      %v732 = vpop.f32.mrb[0].mxu0
      %v733 = vpop.f32.mrb[0].mxu0
      %v734 = vadd.f32 %v591, %v733
      %v735 = vpop.f32.mrb[0].mxu0
      %736 = vdwg.mxu0
      %v737 = vmax.f32 %v675, 0.0
      %v738 = vmax.f32 %v678, 0.0
      %v739 = vmax.f32 %v683, 0.0
      %v740 = vmax.f32 %v686, 0.0
      %v741 = vmax.f32 %v691, 0.0
      %v742 = vmax.f32 %v694, 0.0
      %v743 = vmax.f32 %v699, 0.0
      %v744 = vmax.f32 %v702, 0.0
      %v745 = vmax.f32 %v707, 0.0
      %v746 = vmax.f32 %v710, 0.0
      %v747 = vmax.f32 %v715, 0.0
      %v748 = vmax.f32 %v718, 0.0
      %v749 = vmax.f32 %v723, 0.0
      %v750 = vmax.f32 %v726, 0.0
      %v751 = vmax.f32 %v731, 0.0
      %v752 = vmax.f32 %v734, 0.0
      %v753 = vpack.c.bf16 %v738, %v737
      %v754 = vpack.c.bf16 %v740, %v739
      %v755 = vpack.c.bf16 %v742, %v741
      %v756 = vpack.c.bf16 %v744, %v743
      %v757 = vpack.c.bf16 %v746, %v745
      %v758 = vpack.c.bf16 %v748, %v747
      %v759 = vpack.c.bf16 %v750, %v749
      %v760 = vpack.c.bf16 %v752, %v751
      %s761 = scalar_lea.vmem %s2, 128
      %v762 = vld [vmem:[%s761] sm:$0xf]
      %v763 = vld [vmem:[%s761 + $0x4] sm:$0xf]
      %v764 = vld [vmem:[%s761 + $0x8] sm:$0xf]
      %v765 = vld [vmem:[%s761 + $0xc] sm:$0xf]
      %v766 = vld [vmem:[%s761 + $0x10] sm:$0xf]
      %v767 = vld [vmem:[%s761 + $0x14] sm:$0xf]
      %v768 = vld [vmem:[%s761 + $0x18] sm:$0xf]
      %v769 = vld [vmem:[%s761 + $0x1c] sm:$0xf]
      %v770 = vld [vmem:[%s761 + $0x20] sm:$0xf]
      %v771 = vld [vmem:[%s761 + $0x24] sm:$0xf]
      %v772 = vld [vmem:[%s761 + $0x28] sm:$0xf]
      %v773 = vld [vmem:[%s761 + $0x2c] sm:$0xf]
      %v774 = vld [vmem:[%s761 + $0x30] sm:$0xf]
      %v775 = vld [vmem:[%s761 + $0x34] sm:$0xf]
      %v776 = vld [vmem:[%s761 + $0x38] sm:$0xf]
      %v777 = vld [vmem:[%s761 + $0x3c] sm:$0xf]
      %v778 = vld [vmem:[%s3 + $0x2] sm:$0x1]
      %v779 = vlaneseq
      %v780 = vshrl.u32 %v779, 7
      %v781 = vsub.s32 0, %v780
      %v782 = vrot.slane %v778, %v781
      %v799 = vunpack.c.l.b16 %v762
      %v800 = vunpack.c.l.b16 %v763
      %v801 = vunpack.c.l.b16 %v764
      %v802 = vunpack.c.l.b16 %v765
      %v803 = vunpack.c.l.b16 %v766
      %v804 = vunpack.c.l.b16 %v767
      %v805 = vunpack.c.l.b16 %v768
      %v806 = vunpack.c.l.b16 %v769
      %v807 = vunpack.c.l.b16 %v770
      %v808 = vunpack.c.l.b16 %v771
      %v809 = vunpack.c.l.b16 %v772
      %v810 = vunpack.c.l.b16 %v773
      %v811 = vunpack.c.l.b16 %v774
      %v812 = vunpack.c.l.b16 %v775
      %v813 = vunpack.c.l.b16 %v776
      %v814 = vunpack.c.l.b16 %v777
      %v815 = vpack.c.b16 %v800, %v799
      %v816 = vpack.c.b16 %v802, %v801
      %v817 = vpack.c.b16 %v804, %v803
      %v818 = vpack.c.b16 %v806, %v805
      %v819 = vpack.c.b16 %v808, %v807
      %v820 = vpack.c.b16 %v810, %v809
      %v821 = vpack.c.b16 %v812, %v811
      %v822 = vpack.c.b16 %v814, %v813
      %831 = vmatprep.subr.bf16.mxu0 0
      %832 = vmatpush1.bf16.msra.mxu0 %v815
      %833 = vmatprep.subr.bf16.mxu0 0
      %834 = vmatpush1.bf16.msra.mxu0 %v816
      %835 = vmatprep.subr.bf16.mxu0 0
      %836 = vmatpush1.bf16.msra.mxu0 %v817
      %837 = vmatprep.subr.bf16.mxu0 0
      %838 = vmatpush1.bf16.msra.mxu0 %v818
      %839 = vmatprep.subr.bf16.mxu0 0
      %840 = vmatpush1.bf16.msra.mxu0 %v819
      %841 = vmatprep.subr.bf16.mxu0 0
      %842 = vmatpush1.bf16.msra.mxu0 %v820
      %843 = vmatprep.subr.bf16.mxu0 0
      %844 = vmatpush1.bf16.msra.mxu0 %v821
      %845 = vmatprep.subr.bf16.mxu0 0
      %846 = vmatpush1.bf16.msra.mxu0 %v822
      %847 = vmatprep.subr.bf16.mxu0 0
      %848 = vmatpush1.bf16.msra.mxu0 0
      %849 = vmatprep.subr.bf16.mxu0 0
      %850 = vmatpush1.bf16.msra.mxu0 0
      %851 = vmatprep.subr.bf16.mxu0 0
      %852 = vmatpush1.bf16.msra.mxu0 0
      %853 = vmatprep.subr.bf16.mxu0 0
      %854 = vmatpush1.bf16.msra.mxu0 0
      %855 = vmatprep.subr.bf16.mxu0 0
      %856 = vmatpush1.bf16.msra.mxu0 0
      %857 = vmatprep.subr.bf16.mxu0 0
      %858 = vmatpush1.bf16.msra.mxu0 0
      %859 = vmatprep.subr.bf16.mxu0 0
      %860 = vmatpush1.bf16.msra.mxu0 0
      %861 = vmatprep.subr.bf16.mxu0 0
      %862 = vmatpush1.bf16.msra.mxu0 0
      %863 = vmatprep.mubr.bf16.mxu0 0
      %864 = vmatmul.mubr.bf16.gmra.mrb[0].mxu0 %v753
      %v865 = vpop.f32.mrb[0].mxu0
      %v866 = vadd.f32 %v782, %v865
      %v867 = vpop.f32.mrb[0].mxu0
      %v868 = vpop.f32.mrb[0].mxu0
      %v869 = vadd.f32 %v782, %v868
      %v870 = vpop.f32.mrb[0].mxu0
      %871 = vmatprep.mubr.bf16.mxu0 0
      %872 = vmatmul.mubr.bf16.gmra.mrb[0].mxu0 %v754
      %v873 = vpop.f32.mrb[0].mxu0
      %v874 = vadd.f32 %v782, %v873
      %v875 = vpop.f32.mrb[0].mxu0
      %v876 = vpop.f32.mrb[0].mxu0
      %v877 = vadd.f32 %v782, %v876
      %v878 = vpop.f32.mrb[0].mxu0
      %879 = vmatprep.mubr.bf16.mxu0 0
      %880 = vmatmul.mubr.bf16.gmra.mrb[0].mxu0 %v755
      %v881 = vpop.f32.mrb[0].mxu0
      %v882 = vadd.f32 %v782, %v881
      %v883 = vpop.f32.mrb[0].mxu0
      %v884 = vpop.f32.mrb[0].mxu0
      %v885 = vadd.f32 %v782, %v884
      %v886 = vpop.f32.mrb[0].mxu0
      %887 = vmatprep.mubr.bf16.mxu0 0
      %888 = vmatmul.mubr.bf16.gmra.mrb[0].mxu0 %v756
      %v889 = vpop.f32.mrb[0].mxu0
      %v890 = vadd.f32 %v782, %v889
      %v891 = vpop.f32.mrb[0].mxu0
      %v892 = vpop.f32.mrb[0].mxu0
      %v893 = vadd.f32 %v782, %v892
      %v894 = vpop.f32.mrb[0].mxu0
      %895 = vmatprep.mubr.bf16.mxu0 0
      %896 = vmatmul.mubr.bf16.gmra.mrb[0].mxu0 %v757
      %v897 = vpop.f32.mrb[0].mxu0
      %v898 = vadd.f32 %v782, %v897
      %v899 = vpop.f32.mrb[0].mxu0
      %v900 = vpop.f32.mrb[0].mxu0
      %v901 = vadd.f32 %v782, %v900
      %v902 = vpop.f32.mrb[0].mxu0
      %903 = vmatprep.mubr.bf16.mxu0 0
      %904 = vmatmul.mubr.bf16.gmra.mrb[0].mxu0 %v758
      %v905 = vpop.f32.mrb[0].mxu0
      %v906 = vadd.f32 %v782, %v905
      %v907 = vpop.f32.mrb[0].mxu0
      %v908 = vpop.f32.mrb[0].mxu0
      %v909 = vadd.f32 %v782, %v908
      %v910 = vpop.f32.mrb[0].mxu0
      %911 = vmatprep.mubr.bf16.mxu0 0
      %912 = vmatmul.mubr.bf16.gmra.mrb[0].mxu0 %v759
      %v913 = vpop.f32.mrb[0].mxu0
      %v914 = vadd.f32 %v782, %v913
      %v915 = vpop.f32.mrb[0].mxu0
      %v916 = vpop.f32.mrb[0].mxu0
      %v917 = vadd.f32 %v782, %v916
      %v918 = vpop.f32.mrb[0].mxu0
      %919 = vmatprep.mubr.bf16.mxu0 0
      %920 = vmatmul.mubr.bf16.gmra.mrb[0].mxu0 %v760
      %v921 = vpop.f32.mrb[0].mxu0
      %v922 = vadd.f32 %v782, %v921
      %v923 = vpop.f32.mrb[0].mxu0
      %v924 = vpop.f32.mrb[0].mxu0
      %v925 = vadd.f32 %v782, %v924
      %v926 = vpop.f32.mrb[0].mxu0
      %927 = vdwg.mxu0
      %928 = vst [vmem:[%s199] sm:$0xff] %v866
      %929 = vst [vmem:[%s199 + $0x8] sm:$0xff] %v869
      %930 = vst [vmem:[%s199 + $0x10] sm:$0xff] %v874
      %931 = vst [vmem:[%s199 + $0x18] sm:$0xff] %v877
      %932 = vst [vmem:[%s199 + $0x20] sm:$0xff] %v882
      %933 = vst [vmem:[%s199 + $0x28] sm:$0xff] %v885
      %934 = vst [vmem:[%s199 + $0x30] sm:$0xff] %v890
      %935 = vst [vmem:[%s199 + $0x38] sm:$0xff] %v893
      %936 = vst [vmem:[%s199 + $0x40] sm:$0xff] %v898
      %937 = vst [vmem:[%s199 + $0x48] sm:$0xff] %v901
      %938 = vst [vmem:[%s199 + $0x50] sm:$0xff] %v906
      %939 = vst [vmem:[%s199 + $0x58] sm:$0xff] %v909
      %940 = vst [vmem:[%s199 + $0x60] sm:$0xff] %v914
      %941 = vst [vmem:[%s199 + $0x68] sm:$0xff] %v917
      %942 = vst [vmem:[%s199 + $0x70] sm:$0xff] %v922
      %943 = vst [vmem:[%s199 + $0x78] sm:$0xff] %v925
      %s944 = smul.u32 16, %s15
      %p945 = scmp.lt.s32.totalorder %s944, 31
      %s946 = scalar_select %p945, %s944, 31
      %s947 = smul.addr %s946, 8
      %s948 = scalar_lea.vmem %s4, %s947
      // Predicated region
      $region37: #{actor_critic_forward.1} parent=35 // pred_check
        %p949 = pneg %p122
      $region38: #{actor_critic_forward.1} parent=35 // pred_check_branch
        %951 = sbr.rel (%p949) target = $region40
      $region39: #{actor_critic_forward.1} parent=35 // pred_region
        %s952 = smul.u32 16, %s15
      $region40: #{actor_critic_forward.1} parent=35 // pred_fallthru
        _
    $region36: #{actor_critic_forward.1} parent=5 // pred_fallthru
      _
    %p953 = scmp.le.s32.totalorder 2, %s10
    // Predicated region
    $region41: #{actor_critic_forward.1} parent=5 // pred_check
      %p954 = pneg %p953
    $region42: #{actor_critic_forward.1} parent=5 // pred_check_branch
      %956 = sbr.rel (%p954) target = $region44
    $region43: #{actor_critic_forward.1} parent=5 // pred_region
      %s957 = ssub.s32 %s10, 2
      // Predicated region
      $region45: #{actor_critic_forward.1} parent=43 // pred_check
        %p958 = pneg %p128
      $region46: #{actor_critic_forward.1} parent=43 // pred_check_branch
        %960 = sbr.rel (%p958) target = $region48
      $region47: #{actor_critic_forward.1} parent=43 // pred_region
        %s961 = smul.u32 16, %s16
        %p962 = scmp.lt.s32.totalorder %s961, 31
        %s963 = scalar_select %p962, %s961, 31
        %s964 = smul.addr %s963, 8
        %s965 = scalar_lea.vmem %s4, %s964
      $region48: #{actor_critic_forward.1} parent=43 // pred_fallthru
        _
    $region44: #{actor_critic_forward.1} parent=5 // pred_fallthru
      _
  $region6: #{actor_critic_forward.1} parent=0 // loop_footer
    %s14 = sadd.s32 1, %s10
  $region7: #{actor_critic_forward.1} parent=0 // loop_footer_branch
    %9 = sbr.rel target = $region3
  $region8: #{actor_critic_forward.1} parent=0 // loop_exit
    _

</llo_original>
